<compile_context>
chip_gen: v7x
topology: tpu7x:2x2x1
jax: 0.10.0
libtpu: 0.0.40
codegen_flags: <defaults>
</compile_context>

<pallas_src>
import functools

import jax
import jax.numpy as jnp
from jax.experimental import pallas as pl
from jax.experimental.pallas import tpu as pltpu

HID_PAD = 128   # lane-dense packed width of the fused hidden layers (2H <= 128)
OUT_PAD = 8     # lane width of the fused output slab (P + 1 <= 8)


def _round_up(n, m):
    return ((n + m - 1) // m) * m


# --------------------------------------------------------------------------
# Pallas kernel: fused policy+value MLP (3 matmuls, 2 tanh) per batch tile.
# bf16 operands into the MXU, f32 accumulation / bias / tanh.
# --------------------------------------------------------------------------
def ffn_kernel(x_ref, w1_ref, w2_ref, w3_ref, b_ref, out_ref):
    x = x_ref[...]                                              # [TB, D] bf16
    h = jnp.dot(x, w1_ref[...], preferred_element_type=jnp.float32)
    h = jnp.tanh(h + b_ref[0:1, :])                             # f32
    h = jnp.dot(h.astype(jnp.bfloat16), w2_ref[...],
                preferred_element_type=jnp.float32)
    h = jnp.tanh(h + b_ref[1:2, :])                             # f32
    out = jnp.dot(h.astype(jnp.bfloat16), w3_ref[...],
                  preferred_element_type=jnp.float32)           # [TB, 8]
    out_ref[...] = out + b_ref[2:3, :OUT_PAD]


@functools.partial(jax.jit, static_argnames=("p_out", "block_b"))
def ffn_forward(x, w1, w2, w3, b, *, p_out, block_b=2048):
    """x: [B, D] float32.  Returns dict(policy=[B, P], value=[B])."""
    B, D = x.shape

    # ---- batch tile selection -------------------------------------------
    # Large tiles amortize per-step pipeline overhead.  Per-row VMEM is
    # ~1.2 KB (bf16 x + f32 hidden temporaries + f32 8-lane out, double
    # buffered), so tb=2048 uses ~3 MB: safely under v5e's 16 MiB scoped
    # default (and v6e/v7x's 32 MiB).  Sweep block_b up for very large B.
    tb = min(block_b, _round_up(B, 8))
    # Keep >= 2 grid steps so the "parallel" batch axis can actually use both
    # TensorCores on v7x (harmless on single-TC v5e/v6e).
    if tb >= B and B > 8:
        tb = _round_up(pl.cdiv(B, 2), 8)
    Bp = _round_up(B, tb)

    xb = x.astype(jnp.bfloat16)
    if Bp != B:                         # ragged batch: pad, slice off at end
        xb = jnp.pad(xb, ((0, Bp - B), (0, 0)))

    grid = (Bp // tb,)

    cost = pl.CostEstimate(
        flops=2 * Bp * (D * HID_PAD + HID_PAD * HID_PAD + HID_PAD * OUT_PAD),
        transcendentals=2 * Bp * HID_PAD,
        bytes_accessed=(xb.size * 2 + w1.size * 2 + w2.size * 2 + w3.size * 2
                        + b.size * 4 + Bp * OUT_PAD * 4),
    )

    out = pl.pallas_call(
        ffn_kernel,
        grid=grid,
        in_specs=[
            pl.BlockSpec((tb, D), lambda i: (i, 0)),             # x streamed over B
            # Constant-index weights/biases: DMA'd once, stay VMEM-resident
            # across grid steps (Pallas skips repeat DMAs for unchanged blocks).
            pl.BlockSpec((D, HID_PAD), lambda i: (0, 0)),        # fused W1
            pl.BlockSpec((HID_PAD, HID_PAD), lambda i: (0, 0)),  # fused W2
            pl.BlockSpec((HID_PAD, OUT_PAD), lambda i: (0, 0)),  # fused W3 (8 lanes)
            pl.BlockSpec((3, HID_PAD), lambda i: (0, 0)),        # packed biases
        ],
        out_specs=pl.BlockSpec((tb, OUT_PAD), lambda i: (i, 0)),  # 8-lane slab
        out_shape=jax.ShapeDtypeStruct((Bp, OUT_PAD), jnp.float32),
        compiler_params=pltpu.CompilerParams(
            dimension_semantics=("parallel",)),
        cost_estimate=cost,
    )(xb, w1, w2, w3, b)

    # Slices come off the tiny 8-lane slab (32 B/row), so wrapper-side
    # materialization is cheap.
    return {"policy": out[:B, :p_out], "value": out[:B, p_out]}   # .view(-1)


# --------------------------------------------------------------------------
# Parameter construction ("normc" init) and one-time host-side fused packing.
# --------------------------------------------------------------------------
def normc_linear(key, in_dim, out_dim, scale):
    # PyTorch weight is [out, in]; normalize each row (dim=1), scale, then
    # transpose to the [in, out] kernel layout.  Bias = zeros.
    w = jax.random.normal(key, (out_dim, in_dim), dtype=jnp.float32)
    w = w * scale / jnp.linalg.norm(w, axis=1, keepdims=True)
    return w.T, jnp.zeros((1, out_dim), dtype=jnp.float32)


def build_head(key, sizes):
    """sizes = [D, H, H, OUT]; last layer scale = 0.01, others 1."""
    params = []
    keys = jax.random.split(key, len(sizes) - 1)
    for i, (din, dout) in enumerate(zip(sizes[:-1], sizes[1:])):
        scale = 0.01 if i == len(sizes) - 2 else 1.0
        w, b = normc_linear(keys[i], din, dout, scale)
        params += [w, b]
    return tuple(params)


def pack_fused_params(p_params, v_params):
    """Pack both heads into 3 lane-dense bf16 weights + 1 f32 bias array.

    Off-diagonal blocks are exact zeros so the two heads cannot leak into
    each other.  Output columns: [0:P) = policy, P = value, rest = 0.
    """
    pw1, pb1, pw2, pb2, pw3, pb3 = p_params
    vw1, vb1, vw2, vb2, vw3, vb3 = v_params
    D, H = pw1.shape
    P = pw3.shape[1]
    assert 2 * H <= HID_PAD and P + 1 <= OUT_PAD

    w1 = jnp.zeros((D, HID_PAD), jnp.float32)
    w1 = w1.at[:, :H].set(pw1).at[:, H:2 * H].set(vw1)

    w2 = jnp.zeros((HID_PAD, HID_PAD), jnp.float32)
    w2 = w2.at[:H, :H].set(pw2).at[H:2 * H, H:2 * H].set(vw2)

    w3 = jnp.zeros((HID_PAD, OUT_PAD), jnp.float32)
    w3 = w3.at[:H, :P].set(pw3).at[H:2 * H, P:P + 1].set(vw3)

    b = jnp.zeros((3, HID_PAD), jnp.float32)
    b = b.at[0, :H].set(pb1[0]).at[0, H:2 * H].set(vb1[0])
    b = b.at[1, :H].set(pb2[0]).at[1, H:2 * H].set(vb2[0])
    b = b.at[2, :P].set(pb3[0]).at[2, P].set(vb3[0, 0])

    return (w1.astype(jnp.bfloat16), w2.astype(jnp.bfloat16),
            w3.astype(jnp.bfloat16), b, P)


# --------------------------------------------------------------------------
def reference_forward(x, p_params, v_params, mxu_bf16=False):
    """Pure-JAX reference.  mxu_bf16=True mirrors the kernel's bf16 MXU
    operands (f32 accumulation), for a tight-tolerance check."""
    def lin(h, w, b):
        if mxu_bf16:
            return jnp.dot(h.astype(jnp.bfloat16), w.astype(jnp.bfloat16),
                           preferred_element_type=jnp.float32) + b
        return jnp.dot(h, w, precision=jax.lax.Precision.HIGHEST) + b

    def mlp(params):
        h = x
        n = len(params) // 2
        for i in range(n):
            h = lin(h, params[2 * i], params[2 * i + 1])
            if i < n - 1:
                h = jnp.tanh(h)
        return h

    return {"policy": mlp(p_params), "value": mlp(v_params).reshape(-1)}


if __name__ == "__main__":
    key = jax.random.PRNGKey(0)
    k_x, k_p, k_v = jax.random.split(key, 3)

    # obs dim / hidden (config.layers = [32,'tanh',32,'tanh']) / policy size.
    # B=200 is intentionally ragged to exercise the pad-and-slice path.
    B, D, H = 200, 16, 32
    P_OUT = 4                      # dist_class.model_output_size

    x = jax.random.normal(k_x, (B, D), dtype=jnp.float32)
    p_params = build_head(k_p, [D, H, H, P_OUT])
    v_params = build_head(k_v, [D, H, H, 1])

    # One-time host-side packing of both heads into the fused layout.
    w1, w2, w3, bias, P = pack_fused_params(p_params, v_params)

    pred = ffn_forward(x, w1, w2, w3, bias, p_out=P)
    jax.block_until_ready(pred)

    assert pred["policy"].shape == (B, P_OUT)
    assert pred["value"].shape == (B,)

    # Tight check vs a reference that uses the same bf16-operand MXU math.
    ref_bf16 = reference_forward(x, p_params, v_params, mxu_bf16=True)
    assert jnp.allclose(pred["policy"], ref_bf16["policy"], atol=5e-4)
    assert jnp.allclose(pred["value"], ref_bf16["value"], atol=5e-4)

    # Loose sanity check vs a full-f32 reference (bf16 MXU operands differ).
    ref_f32 = reference_forward(x, p_params, v_params, mxu_bf16=False)
    assert jnp.allclose(pred["policy"], ref_f32["policy"], atol=1e-2)
    assert jnp.allclose(pred["value"], ref_f32["value"], atol=1e-2)

    # TODO(synk): dist_class.sample()/argmax() for the `argmax` branch is
    # distribution-specific glue and is not part of the kernel hot path.
    print("KERNEL_OK")
</pallas_src>

<mosaic_0001>
module attributes {stable_mosaic.version = 11 : i64} {
  func.func @ffn_kernel(%arg0: i32, %arg1: memref<104x16xbf16, #tpu.memory_space<vmem>>, %arg2: memref<16x128xbf16, #tpu.memory_space<vmem>>, %arg3: memref<128x128xbf16, #tpu.memory_space<vmem>>, %arg4: memref<128x8xbf16, #tpu.memory_space<vmem>>, %arg5: memref<3x128xf32, #tpu.memory_space<vmem>>, %arg6: memref<104x8xf32, #tpu.memory_space<vmem>>) attributes {dimension_semantics = [#tpu.dimension_semantics<parallel>], iteration_bounds = array<i64: 2>, scalar_prefetch = 0 : i64, scratch_operands = 0 : i64, tpu.core_type = #tpu.core_type<tc>, window_params = [{transform_indices = @transform_0, window_bounds = array<i64: 104, 16>}, {pipeline_mode = #tpu.pipeline_mode<synchronous>, transform_indices = @transform_1, window_bounds = array<i64: 16, 128>}, {pipeline_mode = #tpu.pipeline_mode<synchronous>, transform_indices = @transform_2, window_bounds = array<i64: 128, 128>}, {pipeline_mode = #tpu.pipeline_mode<synchronous>, transform_indices = @transform_3, window_bounds = array<i64: 128, 8>}, {pipeline_mode = #tpu.pipeline_mode<synchronous>, transform_indices = @transform_4, window_bounds = array<i64: 3, 128>}, {transform_indices = @transform_5, window_bounds = array<i64: 104, 8>}]} {
    %c0 = arith.constant 0 : index
    %c0_0 = arith.constant 0 : index
    %0 = vector.load %arg1[%c0, %c0_0] : memref<104x16xbf16, #tpu.memory_space<vmem>>, vector<104x16xbf16>
    %c0_1 = arith.constant 0 : index
    %c0_2 = arith.constant 0 : index
    %1 = vector.load %arg2[%c0_1, %c0_2] : memref<16x128xbf16, #tpu.memory_space<vmem>>, vector<16x128xbf16>
    %cst = arith.constant dense<0.000000e+00> : vector<104x128xf32>
    %2 = tpu.matmul %0, %1, %cst {dimension_numbers = #tpu.dot_dimension_numbers<[1], [0], [0], [1], [0, 0, 1, 1], [], []>} : vector<104x16xbf16>, vector<16x128xbf16>, vector<104x128xf32> -> vector<104x128xf32>
    %c0_3 = arith.constant 0 : index
    %c0_4 = arith.constant 0 : index
    %3 = vector.load %arg5[%c0_3, %c0_4] : memref<3x128xf32, #tpu.memory_space<vmem>>, vector<1x128xf32>
    %4 = vector.broadcast %3 : vector<1x128xf32> to vector<104x128xf32>
    %5 = arith.addf %2, %4 : vector<104x128xf32>
    %6 = math.tanh %5 : vector<104x128xf32>
    %7 = arith.truncf %6 : vector<104x128xf32> to vector<104x128xbf16>
    %c0_5 = arith.constant 0 : index
    %c0_6 = arith.constant 0 : index
    %8 = vector.load %arg3[%c0_5, %c0_6] : memref<128x128xbf16, #tpu.memory_space<vmem>>, vector<128x128xbf16>
    %cst_7 = arith.constant dense<0.000000e+00> : vector<104x128xf32>
    %9 = tpu.matmul %7, %8, %cst_7 {dimension_numbers = #tpu.dot_dimension_numbers<[1], [0], [0], [1], [0, 0, 1, 1], [], []>} : vector<104x128xbf16>, vector<128x128xbf16>, vector<104x128xf32> -> vector<104x128xf32>
    %c1 = arith.constant 1 : index
    %c0_8 = arith.constant 0 : index
    %10 = vector.load %arg5[%c1, %c0_8] : memref<3x128xf32, #tpu.memory_space<vmem>>, vector<1x128xf32>
    %11 = vector.broadcast %10 : vector<1x128xf32> to vector<104x128xf32>
    %12 = arith.addf %9, %11 : vector<104x128xf32>
    %13 = math.tanh %12 : vector<104x128xf32>
    %14 = arith.truncf %13 : vector<104x128xf32> to vector<104x128xbf16>
    %c0_9 = arith.constant 0 : index
    %c0_10 = arith.constant 0 : index
    %15 = vector.load %arg4[%c0_9, %c0_10] : memref<128x8xbf16, #tpu.memory_space<vmem>>, vector<128x8xbf16>
    %cst_11 = arith.constant dense<0.000000e+00> : vector<104x8xf32>
    %16 = tpu.matmul %14, %15, %cst_11 {dimension_numbers = #tpu.dot_dimension_numbers<[1], [0], [0], [1], [0, 0, 1, 1], [], []>} : vector<104x128xbf16>, vector<128x8xbf16>, vector<104x8xf32> -> vector<104x8xf32>
    %c2 = arith.constant 2 : index
    %c0_12 = arith.constant 0 : index
    %17 = vector.load %arg5[%c2, %c0_12] : memref<3x128xf32, #tpu.memory_space<vmem>>, vector<1x8xf32>
    %18 = vector.broadcast %17 : vector<1x8xf32> to vector<104x8xf32>
    %19 = arith.addf %16, %18 : vector<104x8xf32>
    %c0_13 = arith.constant 0 : index
    %c0_14 = arith.constant 0 : index
    %20 = vector.load %arg6[%c0_13, %c0_14] : memref<104x8xf32, #tpu.memory_space<vmem>>, vector<104x8xf32>
    tpu.vector_store %arg6[%c0_13, %c0_14], %19 {strides = array<i32>} : memref<104x8xf32, #tpu.memory_space<vmem>>, vector<104x8xf32>,
    return
  }
  func.func @transform_0(%arg0: i32) -> (i32, i32) {
    %c0_i32 = arith.constant 0 : i32
    %c0_i32_0 = arith.constant 0 : i32
    return %arg0, %c0_i32 : i32, i32
  }
  func.func @transform_1(%arg0: i32) -> (i32, i32) {
    %c0_i32 = arith.constant 0 : i32
    %c0_i32_0 = arith.constant 0 : i32
    %c0_i32_1 = arith.constant 0 : i32
    return %c0_i32, %c0_i32_0 : i32, i32
  }
  func.func @transform_2(%arg0: i32) -> (i32, i32) {
    %c0_i32 = arith.constant 0 : i32
    %c0_i32_0 = arith.constant 0 : i32
    %c0_i32_1 = arith.constant 0 : i32
    return %c0_i32, %c0_i32_0 : i32, i32
  }
  func.func @transform_3(%arg0: i32) -> (i32, i32) {
    %c0_i32 = arith.constant 0 : i32
    %c0_i32_0 = arith.constant 0 : i32
    %c0_i32_1 = arith.constant 0 : i32
    return %c0_i32, %c0_i32_0 : i32, i32
  }
  func.func @transform_4(%arg0: i32) -> (i32, i32) {
    %c0_i32 = arith.constant 0 : i32
    %c0_i32_0 = arith.constant 0 : i32
    %c0_i32_1 = arith.constant 0 : i32
    return %c0_i32, %c0_i32_0 : i32, i32
  }
  func.func @transform_5(%arg0: i32) -> (i32, i32) {
    %c0_i32 = arith.constant 0 : i32
    %c0_i32_0 = arith.constant 0 : i32
    return %arg0, %c0_i32 : i32, i32
  }
}

</mosaic_0001>

<llo_original>
// kernel: ffn_forward.1
$region0: #{ffn_forward.1}
  #allocation0 [shape = 'u32[]', space=smem, size = 0x4, offset = 0x4, fixed_abs, tag = 'smem constant byte address 0x4 - core index']
  #allocation1 [shape = 'u32[144,128]{1,0:T(1,128)}', space=vmem, size = 0x12000, scoped, tag = 'internal scratch']
  %s0 = inlined_call_operand.vmem [shape: bf16[208,16], index: 0, kind: input, shape index: {}]
  %s1 = inlined_call_operand.vmem [shape: bf16[16,128], index: 1, kind: input, shape index: {}]
  %s2 = inlined_call_operand.vmem [shape: bf16[128,128], index: 2, kind: input, shape index: {}]
  %s3 = inlined_call_operand.vmem [shape: bf16[128,8], index: 3, kind: input, shape index: {}]
  %s4 = inlined_call_operand.vmem [shape: f32[3,128], index: 4, kind: input, shape index: {}]
  %s5 = inlined_call_operand.vmem [shape: f32[208,8], index: 5, kind: output, shape index: {}]
  %s6 = sld [smem:[#allocation0]]
  $region53: #{ffn_forward.1} parent=0
    _
  %s8 = ssub.s32 1, %s6
  %s9 = scalar_select 0, %s8, %s6
  loop: start=0, step=1, limit=4
  $region2: #{ffn_forward.1} parent=0 // loop_pre_header
    _
  $region3: #{ffn_forward.1} parent=0 // loop_header
    %s11 = sphi 0, %s15
    %p12 = scmp.ge.s32.totalorder %s11, 4
    %s21 = sphi 0, %s23
    %s24 = sphi 0, %s21
    %s25 = sphi 0, %s24
    %s41 = sphi 0, %s25
    %s45 = sphi 0, %s45
    %s47 = sphi 0, %s45
    %s48 = sphi 0, %s47
    %s62 = sphi 0, %s48
    %s66 = sphi 0, %s66
    %s68 = sphi 0, %s66
    %s69 = sphi 0, %s68
    %s83 = sphi 0, %s69
    %s87 = sphi 0, %s87
    %s89 = sphi 0, %s87
    %s90 = sphi 0, %s89
    %s104 = sphi 0, %s90
    %s108 = sphi 0, %s108
    %s110 = sphi 0, %s108
    %s111 = sphi 0, %s110
    %s125 = sphi 0, %s111
    %s131 = sphi 0, %s133
    %s134 = sphi 0, %s131
    %s135 = sphi 0, %s134
    %s151 = sphi 0, %s135
  $region4: #{ffn_forward.1} parent=0 // loop_header_branch
    %14 = sbr.rel (%p12) target = $region8
  $region5: #{ffn_forward.1} parent=0 // loop_body
    %s16 = ssub.s32 %s11, 1
    %s17 = ssub.s32 %s11, 2
    %s18 = sadd.s32 %s11, 1
    %s19 = ssub.s32 %s11, %s18
    %p20 = scmp.eq.s32.totalorder %s19, 0
    %s22 = sadd.s32 %s21, 1
    %s23 = scalar_select %p20, %s21, %s22
    %p26 = pneg %p20
    %p27 = scmp.eq.s32.totalorder %s11, 1
    %p28 = por %p26, %p27
    %p29 = scmp.ne.s32.totalorder %s21, %s24
    %p30 = scmp.eq.s32.totalorder %s11, 0
    %p31 = por %p29, %p30
    %p32 = scmp.ne.s32.totalorder %s21, %s24
    %p33 = scmp.eq.s32.totalorder %s16, 1
    %p34 = por %p32, %p33
    %p35 = scmp.ne.s32.totalorder %s24, %s25
    %p36 = scmp.eq.s32.totalorder %s16, 0
    %p37 = por %p35, %p36
    %p38 = scmp.ne.s32.totalorder %s24, %s25
    %p39 = scmp.eq.s32.totalorder %s17, 1
    %p40 = por %p38, %p39
    %p42 = scmp.ne.s32.totalorder %s25, %s41
    %p43 = scmp.eq.s32.totalorder %s17, 0
    %p44 = por %p42, %p43
    %s46 = sadd.s32 %s45, 1
    %p49 = scmp.eq.s32.totalorder %s11, 1
    %p50 = scmp.ne.s32.totalorder %s45, %s47
    %p51 = scmp.eq.s32.totalorder %s11, 0
    %p52 = por %p50, %p51
    %p53 = scmp.ne.s32.totalorder %s45, %s47
    %p54 = scmp.eq.s32.totalorder %s16, 1
    %p55 = por %p53, %p54
    %p56 = scmp.ne.s32.totalorder %s47, %s48
    %p57 = scmp.eq.s32.totalorder %s16, 0
    %p58 = por %p56, %p57
    %p59 = scmp.ne.s32.totalorder %s47, %s48
    %p60 = scmp.eq.s32.totalorder %s17, 1
    %p61 = por %p59, %p60
    %p63 = scmp.ne.s32.totalorder %s48, %s62
    %p64 = scmp.eq.s32.totalorder %s17, 0
    %p65 = por %p63, %p64
    %s67 = sadd.s32 %s66, 1
    %p70 = scmp.eq.s32.totalorder %s11, 1
    %p71 = scmp.ne.s32.totalorder %s66, %s68
    %p72 = scmp.eq.s32.totalorder %s11, 0
    %p73 = por %p71, %p72
    %p74 = scmp.ne.s32.totalorder %s66, %s68
    %p75 = scmp.eq.s32.totalorder %s16, 1
    %p76 = por %p74, %p75
    %p77 = scmp.ne.s32.totalorder %s68, %s69
    %p78 = scmp.eq.s32.totalorder %s16, 0
    %p79 = por %p77, %p78
    %p80 = scmp.ne.s32.totalorder %s68, %s69
    %p81 = scmp.eq.s32.totalorder %s17, 1
    %p82 = por %p80, %p81
    %p84 = scmp.ne.s32.totalorder %s69, %s83
    %p85 = scmp.eq.s32.totalorder %s17, 0
    %p86 = por %p84, %p85
    %s88 = sadd.s32 %s87, 1
    %p91 = scmp.eq.s32.totalorder %s11, 1
    %p92 = scmp.ne.s32.totalorder %s87, %s89
    %p93 = scmp.eq.s32.totalorder %s11, 0
    %p94 = por %p92, %p93
    %p95 = scmp.ne.s32.totalorder %s87, %s89
    %p96 = scmp.eq.s32.totalorder %s16, 1
    %p97 = por %p95, %p96
    %p98 = scmp.ne.s32.totalorder %s89, %s90
    %p99 = scmp.eq.s32.totalorder %s16, 0
    %p100 = por %p98, %p99
    %p101 = scmp.ne.s32.totalorder %s89, %s90
    %p102 = scmp.eq.s32.totalorder %s17, 1
    %p103 = por %p101, %p102
    %p105 = scmp.ne.s32.totalorder %s90, %s104
    %p106 = scmp.eq.s32.totalorder %s17, 0
    %p107 = por %p105, %p106
    %s109 = sadd.s32 %s108, 1
    %p112 = scmp.eq.s32.totalorder %s11, 1
    %p113 = scmp.ne.s32.totalorder %s108, %s110
    %p114 = scmp.eq.s32.totalorder %s11, 0
    %p115 = por %p113, %p114
    %p116 = scmp.ne.s32.totalorder %s108, %s110
    %p117 = scmp.eq.s32.totalorder %s16, 1
    %p118 = por %p116, %p117
    %p119 = scmp.ne.s32.totalorder %s110, %s111
    %p120 = scmp.eq.s32.totalorder %s16, 0
    %p121 = por %p119, %p120
    %p122 = scmp.ne.s32.totalorder %s110, %s111
    %p123 = scmp.eq.s32.totalorder %s17, 1
    %p124 = por %p122, %p123
    %p126 = scmp.ne.s32.totalorder %s111, %s125
    %p127 = scmp.eq.s32.totalorder %s17, 0
    %p128 = por %p126, %p127
    %s129 = ssub.s32 %s11, %s18
    %p130 = scmp.eq.s32.totalorder %s129, 0
    %s132 = sadd.s32 %s131, 1
    %s133 = scalar_select %p130, %s131, %s132
    %p136 = pneg %p130
    %p137 = scmp.eq.s32.totalorder %s11, 1
    %p138 = por %p136, %p137
    %p139 = scmp.ne.s32.totalorder %s131, %s134
    %p140 = scmp.eq.s32.totalorder %s11, 0
    %p141 = por %p139, %p140
    %p142 = scmp.ne.s32.totalorder %s131, %s134
    %p143 = scmp.eq.s32.totalorder %s16, 1
    %p144 = por %p142, %p143
    %p145 = scmp.ne.s32.totalorder %s134, %s135
    %p146 = scmp.eq.s32.totalorder %s16, 0
    %p147 = por %p145, %p146
    %p148 = scmp.ne.s32.totalorder %s134, %s135
    %p149 = scmp.eq.s32.totalorder %s17, 1
    %p150 = por %p148, %p149
    %p152 = scmp.ne.s32.totalorder %s135, %s151
    %p153 = scmp.eq.s32.totalorder %s17, 0
    %p154 = por %p152, %p153
    %p155 = scmp.le.s32.totalorder 1, %s11
    %p156 = scmp.lt.s32.totalorder %s11, 3
    %p157 = pnand %p155, %p156
    %p158 = pneg %p157
    // Predicated region
    $region9: #{ffn_forward.1} parent=5 // pred_check
      _
    $region10: #{ffn_forward.1} parent=5 // pred_check_branch
      %160 = sbr.rel (%p157) target = $region12
    $region11: #{ffn_forward.1} parent=5 // pred_region
      %s161 = ssub.s32 %s11, 1
      // Predicated region
      $region13: #{ffn_forward.1} parent=11 // pred_check
        %p162 = pneg %p58
      $region14: #{ffn_forward.1} parent=11 // pred_check_branch
        %164 = sbr.rel (%p162) target = $region16
      $region15: #{ffn_forward.1} parent=11 // pred_region
        _
      $region16: #{ffn_forward.1} parent=11 // pred_fallthru
        _
      // Predicated region
      $region17: #{ffn_forward.1} parent=11 // pred_check
        %p165 = pneg %p79
      $region18: #{ffn_forward.1} parent=11 // pred_check_branch
        %167 = sbr.rel (%p165) target = $region20
      $region19: #{ffn_forward.1} parent=11 // pred_region
        _
      $region20: #{ffn_forward.1} parent=11 // pred_fallthru
        _
      // Predicated region
      $region21: #{ffn_forward.1} parent=11 // pred_check
        %p168 = pneg %p100
      $region22: #{ffn_forward.1} parent=11 // pred_check_branch
        %170 = sbr.rel (%p168) target = $region24
      $region23: #{ffn_forward.1} parent=11 // pred_region
        _
      $region24: #{ffn_forward.1} parent=11 // pred_fallthru
        _
      // Predicated region
      $region25: #{ffn_forward.1} parent=11 // pred_check
        %p171 = pneg %p121
      $region26: #{ffn_forward.1} parent=11 // pred_check_branch
        %173 = sbr.rel (%p171) target = $region28
      $region27: #{ffn_forward.1} parent=11 // pred_region
        _
      $region28: #{ffn_forward.1} parent=11 // pred_fallthru
        _
    $region12: #{ffn_forward.1} parent=5 // pred_fallthru
      _
    %p174 = scmp.lt.s32.totalorder %s11, 2
    // Predicated region
    $region29: #{ffn_forward.1} parent=5 // pred_check
      %p175 = pneg %p174
    $region30: #{ffn_forward.1} parent=5 // pred_check_branch
      %177 = sbr.rel (%p175) target = $region32
    $region31: #{ffn_forward.1} parent=5 // pred_region
      // Predicated region
      $region33: #{ffn_forward.1} parent=31 // pred_check
        %p178 = pneg %p31
      $region34: #{ffn_forward.1} parent=31 // pred_check_branch
        %180 = sbr.rel (%p178) target = $region36
      $region35: #{ffn_forward.1} parent=31 // pred_region
        %s181 = smul.u32 13, %s11
        %p182 = scmp.lt.s32.totalorder %s181, 25
        %s183 = scalar_select %p182, %s181, 25
        %s184 = smul.addr %s183, 4
        %s185 = scalar_lea.vmem %s0, %s184
        %s186 = smul.u32 13, %s11
      $region36: #{ffn_forward.1} parent=31 // pred_fallthru
        _
    $region32: #{ffn_forward.1} parent=5 // pred_fallthru
      _
    %p187 = scmp.le.s32.totalorder 1, %s11
    %p188 = scmp.lt.s32.totalorder %s11, 3
    %p189 = pnand %p187, %p188
    %p190 = pneg %p189
    // Predicated region
    $region37: #{ffn_forward.1} parent=5 // pred_check
      _
    $region38: #{ffn_forward.1} parent=5 // pred_check_branch
      %192 = sbr.rel (%p189) target = $region40
    $region39: #{ffn_forward.1} parent=5 // pred_region
      %s193 = ssub.s32 %s11, 1
      %s194 = smul.u32 13, %s16
      %p195 = scmp.lt.s32.totalorder %s194, 25
      %s196 = scalar_select %p195, %s194, 25
      %s197 = smul.addr %s196, 4
      %s198 = scalar_lea.vmem %s0, %s197
      %p199 = pneg %p37
      %p200 = pneg %p34
      %p201 = pneg %p58
      %p202 = pneg %p55
      %p203 = pneg %p79
      %p204 = pneg %p76
      %p205 = pneg %p100
      %p206 = pneg %p97
      %p207 = pneg %p121
      %p208 = pneg %p118
      %p209 = pneg %p147
      %p210 = pneg %p144
      %s211 = smul.u32 13, %s16
      %p212 = scmp.lt.s32.totalorder %s211, 25
      %s213 = scalar_select %p212, %s211, 25
      %s214 = smul.addr %s213, 8
      %s215 = scalar_lea.vmem %s5, %s214
      %s216 = smul.u32 13, %s16
      %p217 = scmp.lt.s32.totalorder %s216, 25
      %s218 = scalar_select %p217, %s216, 25
      %s219 = smul.addr %s218, 4
      %s220 = scalar_lea.vmem %s0, %s219
      %s221 = smul.u32 13, %s16
      %s222 = smul.u32 13, %s16
      %p223 = scmp.lt.s32.totalorder %s222, 25
      %s224 = scalar_select %p223, %s222, 25
      %s225 = smul.addr %s224, 8
      %s226 = scalar_lea.vmem %s5, %s225
      %s227 = smul.u32 13, %s16
      %v229 = vld [vmem:[%s220] sm:$0xf]
      %v230 = vld [vmem:[%s220 + $0x4] sm:$0xf]
      %v231 = vld [vmem:[%s220 + $0x8] sm:$0xf]
      %v232 = vld [vmem:[%s220 + $0xc] sm:$0xf]
      %v233 = vld [vmem:[%s220 + $0x10] sm:$0xf]
      %v234 = vld [vmem:[%s220 + $0x14] sm:$0xf]
      %v235 = vld [vmem:[%s220 + $0x18] sm:$0xf]
      %v236 = vld [vmem:[%s220 + $0x1c] sm:$0xf]
      %v237 = vld [vmem:[%s220 + $0x20] sm:$0xf]
      %v238 = vld [vmem:[%s220 + $0x24] sm:$0xf]
      %v239 = vld [vmem:[%s220 + $0x28] sm:$0xf]
      %v240 = vld [vmem:[%s220 + $0x2c] sm:$0xf]
      %v241 = vld [vmem:[%s220 + $0x30] sm:$0xf]
      %v242 = vld [vmem:[%s1] sm:$0xf]
      %v243 = vld [vmem:[%s1 + $0x4] sm:$0xf]
      %v244 = vld [vmem:[%s4] sm:$0x1]
      %v245 = vlaneseq
      %v246 = vshrl.u32 %v245, 7
      %v247 = vsub.s32 0, %v246
      %v248 = vrot.slane %v244, %v247
      %v262 = vunpack.c.l.b16 %v229
      %v263 = vunpack.c.l.b16 %v230
      %v264 = vunpack.c.l.b16 %v231
      %v265 = vunpack.c.l.b16 %v232
      %v266 = vunpack.c.l.b16 %v233
      %v267 = vunpack.c.l.b16 %v234
      %v268 = vunpack.c.l.b16 %v235
      %v269 = vunpack.c.l.b16 %v236
      %v270 = vunpack.c.l.b16 %v237
      %v271 = vunpack.c.l.b16 %v238
      %v272 = vunpack.c.l.b16 %v239
      %v273 = vunpack.c.l.b16 %v240
      %v274 = vunpack.c.l.b16 %v241
      %v275 = vpack.c.b16 %v263, %v262
      %v276 = vpack.c.b16 %v265, %v264
      %v277 = vpack.c.b16 %v267, %v266
      %v278 = vpack.c.b16 %v269, %v268
      %v279 = vpack.c.b16 %v271, %v270
      %v280 = vpack.c.b16 %v273, %v272
      %v281 = vpack.c.b16 %v274, %v274
      %v284 = vunpack.c.l.b16 %v242
      %v285 = vunpack.c.l.b16 %v243
      %v286 = vpack.c.b16 %v285, %v284
      %vm288 = vcmask 130048
      %v290 = vsel %vm288, %v275, 0
      %v293 = vsel %vm288, %v276, 0
      %v296 = vsel %vm288, %v277, 0
      %v299 = vsel %vm288, %v278, 0
      %v302 = vsel %vm288, %v279, 0
      %v305 = vsel %vm288, %v280, 0
      %v308 = vsel %vm288, %v281, 0
      %310 = vmatprep.subr.bf16.mxu0 0
      %311 = vmatpush1.bf16.msra.mxu0 %v286
      %312 = vmatprep.subr.bf16.mxu0 0
      %313 = vmatpush1.bf16.msra.mxu0 0
      %314 = vmatprep.subr.bf16.mxu0 0
      %315 = vmatpush1.bf16.msra.mxu0 0
      %316 = vmatprep.subr.bf16.mxu0 0
      %317 = vmatpush1.bf16.msra.mxu0 0
      %318 = vmatprep.subr.bf16.mxu0 0
      %319 = vmatpush1.bf16.msra.mxu0 0
      %320 = vmatprep.subr.bf16.mxu0 0
      %321 = vmatpush1.bf16.msra.mxu0 0
      %322 = vmatprep.subr.bf16.mxu0 0
      %323 = vmatpush1.bf16.msra.mxu0 0
      %324 = vmatprep.subr.bf16.mxu0 0
      %325 = vmatpush1.bf16.msra.mxu0 0
      %326 = vmatprep.subr.bf16.mxu0 0
      %327 = vmatpush1.bf16.msra.mxu0 0
      %328 = vmatprep.subr.bf16.mxu0 0
      %329 = vmatpush1.bf16.msra.mxu0 0
      %330 = vmatprep.subr.bf16.mxu0 0
      %331 = vmatpush1.bf16.msra.mxu0 0
      %332 = vmatprep.subr.bf16.mxu0 0
      %333 = vmatpush1.bf16.msra.mxu0 0
      %334 = vmatprep.subr.bf16.mxu0 0
      %335 = vmatpush1.bf16.msra.mxu0 0
      %336 = vmatprep.subr.bf16.mxu0 0
      %337 = vmatpush1.bf16.msra.mxu0 0
      %338 = vmatprep.subr.bf16.mxu0 0
      %339 = vmatpush1.bf16.msra.mxu0 0
      %340 = vmatprep.subr.bf16.mxu0 0
      %341 = vmatpush1.bf16.msra.mxu0 0
      %342 = vmatprep.mubr.bf16.mxu0 0
      %343 = vmatmul.mubr.bf16.gmra.mrb[0].mxu0 %v290
      %v344 = vpop.f32.mrb[0].mxu0
      %v345 = vadd.f32 %v248, %v344
      %v346 = vpop.f32.mrb[0].mxu0
      %v347 = vpop.f32.mrb[0].mxu0
      %v348 = vadd.f32 %v248, %v347
      %v349 = vpop.f32.mrb[0].mxu0
      %350 = vmatprep.mubr.bf16.mxu0 0
      %351 = vmatmul.mubr.bf16.gmra.mrb[0].mxu0 %v293
      %v352 = vpop.f32.mrb[0].mxu0
      %v353 = vadd.f32 %v248, %v352
      %v354 = vpop.f32.mrb[0].mxu0
      %v355 = vpop.f32.mrb[0].mxu0
      %v356 = vadd.f32 %v248, %v355
      %v357 = vpop.f32.mrb[0].mxu0
      %358 = vmatprep.mubr.bf16.mxu0 0
      %359 = vmatmul.mubr.bf16.gmra.mrb[0].mxu0 %v296
      %v360 = vpop.f32.mrb[0].mxu0
      %v361 = vadd.f32 %v248, %v360
      %v362 = vpop.f32.mrb[0].mxu0
      %v363 = vpop.f32.mrb[0].mxu0
      %v364 = vadd.f32 %v248, %v363
      %v365 = vpop.f32.mrb[0].mxu0
      %366 = vmatprep.mubr.bf16.mxu0 0
      %367 = vmatmul.mubr.bf16.gmra.mrb[0].mxu0 %v299
      %v368 = vpop.f32.mrb[0].mxu0
      %v369 = vadd.f32 %v248, %v368
      %v370 = vpop.f32.mrb[0].mxu0
      %v371 = vpop.f32.mrb[0].mxu0
      %v372 = vadd.f32 %v248, %v371
      %v373 = vpop.f32.mrb[0].mxu0
      %374 = vmatprep.mubr.bf16.mxu0 0
      %375 = vmatmul.mubr.bf16.gmra.mrb[0].mxu0 %v302
      %v376 = vpop.f32.mrb[0].mxu0
      %v377 = vadd.f32 %v248, %v376
      %v378 = vpop.f32.mrb[0].mxu0
      %v379 = vpop.f32.mrb[0].mxu0
      %v380 = vadd.f32 %v248, %v379
      %v381 = vpop.f32.mrb[0].mxu0
      %382 = vmatprep.mubr.bf16.mxu0 0
      %383 = vmatmul.mubr.bf16.gmra.mrb[0].mxu0 %v305
      %v384 = vpop.f32.mrb[0].mxu0
      %v385 = vadd.f32 %v248, %v384
      %v386 = vpop.f32.mrb[0].mxu0
      %v387 = vpop.f32.mrb[0].mxu0
      %v388 = vadd.f32 %v248, %v387
      %v389 = vpop.f32.mrb[0].mxu0
      %390 = vmatprep.mubr.bf16.mxu0 0
      %391 = vmatmul.mubr.bf16.gmra.mrb[0].mxu0 %v308
      %v392 = vpop.f32.mrb[0].mxu0
      %v393 = vadd.f32 %v248, %v392
      %v394 = vpop.f32.mrb[0].mxu0
      %v395 = vpop.f32.mrb[0].mxu0
      %v396 = vpop.f32.mrb[0].mxu0
      %397 = vdwg.mxu0
      %v398 = vtanh.pop %v345
      %v399 = vtanh.pop %v348
      %v400 = vtanh.pop %v353
      %v401 = vtanh.pop %v356
      %v402 = vtanh.pop %v361
      %v403 = vtanh.pop %v364
      %v404 = vtanh.pop %v369
      %v405 = vtanh.pop %v372
      %v406 = vtanh.pop %v377
      %v407 = vtanh.pop %v380
      %v408 = vtanh.pop %v385
      %v409 = vtanh.pop %v388
      %v410 = vtanh.pop %v393
      %v411 = vpack.c.bf16 %v399, %v398
      %v412 = vpack.c.bf16 %v401, %v400
      %v413 = vpack.c.bf16 %v403, %v402
      %v414 = vpack.c.bf16 %v405, %v404
      %v415 = vpack.c.bf16 %v407, %v406
      %v416 = vpack.c.bf16 %v409, %v408
      %v417 = vpack.c.bf16 %v410, %v410
      %v418 = vld [vmem:[%s2] sm:$0xf]
      %v419 = vld [vmem:[%s2 + $0x4] sm:$0xf]
      %v420 = vld [vmem:[%s2 + $0x8] sm:$0xf]
      %v421 = vld [vmem:[%s2 + $0xc] sm:$0xf]
      %v422 = vld [vmem:[%s2 + $0x10] sm:$0xf]
      %v423 = vld [vmem:[%s2 + $0x14] sm:$0xf]
      %v424 = vld [vmem:[%s2 + $0x18] sm:$0xf]
      %v425 = vld [vmem:[%s2 + $0x1c] sm:$0xf]
      %v426 = vld [vmem:[%s2 + $0x20] sm:$0xf]
      %v427 = vld [vmem:[%s2 + $0x24] sm:$0xf]
      %v428 = vld [vmem:[%s2 + $0x28] sm:$0xf]
      %v429 = vld [vmem:[%s2 + $0x2c] sm:$0xf]
      %v430 = vld [vmem:[%s2 + $0x30] sm:$0xf]
      %v431 = vld [vmem:[%s2 + $0x34] sm:$0xf]
      %v432 = vld [vmem:[%s2 + $0x38] sm:$0xf]
      %v433 = vld [vmem:[%s2 + $0x3c] sm:$0xf]
      %v434 = vld [vmem:[%s4 + $0x1] sm:$0x1]
      %v435 = vlaneseq
      %v436 = vshrl.u32 %v435, 7
      %v437 = vsub.s32 0, %v436
      %v438 = vrot.slane %v434, %v437
      %v455 = vunpack.c.l.b16 %v418
      %v456 = vunpack.c.l.b16 %v419
      %v457 = vunpack.c.l.b16 %v420
      %v458 = vunpack.c.l.b16 %v421
      %v459 = vunpack.c.l.b16 %v422
      %v460 = vunpack.c.l.b16 %v423
      %v461 = vunpack.c.l.b16 %v424
      %v462 = vunpack.c.l.b16 %v425
      %v463 = vunpack.c.l.b16 %v426
      %v464 = vunpack.c.l.b16 %v427
      %v465 = vunpack.c.l.b16 %v428
      %v466 = vunpack.c.l.b16 %v429
      %v467 = vunpack.c.l.b16 %v430
      %v468 = vunpack.c.l.b16 %v431
      %v469 = vunpack.c.l.b16 %v432
      %v470 = vunpack.c.l.b16 %v433
      %v471 = vpack.c.b16 %v456, %v455
      %v472 = vpack.c.b16 %v458, %v457
      %v473 = vpack.c.b16 %v460, %v459
      %v474 = vpack.c.b16 %v462, %v461
      %v475 = vpack.c.b16 %v464, %v463
      %v476 = vpack.c.b16 %v466, %v465
      %v477 = vpack.c.b16 %v468, %v467
      %v478 = vpack.c.b16 %v470, %v469
      %487 = vmatprep.subr.bf16.mxu0 0
      %488 = vmatpush1.bf16.msra.mxu0 %v471
      %489 = vmatprep.subr.bf16.mxu0 0
      %490 = vmatpush1.bf16.msra.mxu0 %v472
      %491 = vmatprep.subr.bf16.mxu0 0
      %492 = vmatpush1.bf16.msra.mxu0 %v473
      %493 = vmatprep.subr.bf16.mxu0 0
      %494 = vmatpush1.bf16.msra.mxu0 %v474
      %495 = vmatprep.subr.bf16.mxu0 0
      %496 = vmatpush1.bf16.msra.mxu0 %v475
      %497 = vmatprep.subr.bf16.mxu0 0
      %498 = vmatpush1.bf16.msra.mxu0 %v476
      %499 = vmatprep.subr.bf16.mxu0 0
      %500 = vmatpush1.bf16.msra.mxu0 %v477
      %501 = vmatprep.subr.bf16.mxu0 0
      %502 = vmatpush1.bf16.msra.mxu0 %v478
      %503 = vmatprep.subr.bf16.mxu0 0
      %504 = vmatpush1.bf16.msra.mxu0 0
      %505 = vmatprep.subr.bf16.mxu0 0
      %506 = vmatpush1.bf16.msra.mxu0 0
      %507 = vmatprep.subr.bf16.mxu0 0
      %508 = vmatpush1.bf16.msra.mxu0 0
      %509 = vmatprep.subr.bf16.mxu0 0
      %510 = vmatpush1.bf16.msra.mxu0 0
      %511 = vmatprep.subr.bf16.mxu0 0
      %512 = vmatpush1.bf16.msra.mxu0 0
      %513 = vmatprep.subr.bf16.mxu0 0
      %514 = vmatpush1.bf16.msra.mxu0 0
      %515 = vmatprep.subr.bf16.mxu0 0
      %516 = vmatpush1.bf16.msra.mxu0 0
      %517 = vmatprep.subr.bf16.mxu0 0
      %518 = vmatpush1.bf16.msra.mxu0 0
      %519 = vmatprep.mubr.bf16.mxu0 0
      %520 = vmatmul.mubr.bf16.gmra.mrb[0].mxu0 %v411
      %v521 = vpop.f32.mrb[0].mxu0
      %v522 = vadd.f32 %v438, %v521
      %v523 = vpop.f32.mrb[0].mxu0
      %v524 = vpop.f32.mrb[0].mxu0
      %v525 = vadd.f32 %v438, %v524
      %v526 = vpop.f32.mrb[0].mxu0
      %527 = vmatprep.mubr.bf16.mxu0 0
      %528 = vmatmul.mubr.bf16.gmra.mrb[0].mxu0 %v412
      %v529 = vpop.f32.mrb[0].mxu0
      %v530 = vadd.f32 %v438, %v529
      %v531 = vpop.f32.mrb[0].mxu0
      %v532 = vpop.f32.mrb[0].mxu0
      %v533 = vadd.f32 %v438, %v532
      %v534 = vpop.f32.mrb[0].mxu0
      %535 = vmatprep.mubr.bf16.mxu0 0
      %536 = vmatmul.mubr.bf16.gmra.mrb[0].mxu0 %v413
      %v537 = vpop.f32.mrb[0].mxu0
      %v538 = vadd.f32 %v438, %v537
      %v539 = vpop.f32.mrb[0].mxu0
      %v540 = vpop.f32.mrb[0].mxu0
      %v541 = vadd.f32 %v438, %v540
      %v542 = vpop.f32.mrb[0].mxu0
      %543 = vmatprep.mubr.bf16.mxu0 0
      %544 = vmatmul.mubr.bf16.gmra.mrb[0].mxu0 %v414
      %v545 = vpop.f32.mrb[0].mxu0
      %v546 = vadd.f32 %v438, %v545
      %v547 = vpop.f32.mrb[0].mxu0
      %v548 = vpop.f32.mrb[0].mxu0
      %v549 = vadd.f32 %v438, %v548
      %v550 = vpop.f32.mrb[0].mxu0
      %551 = vmatprep.mubr.bf16.mxu0 0
      %552 = vmatmul.mubr.bf16.gmra.mrb[0].mxu0 %v415
      %v553 = vpop.f32.mrb[0].mxu0
      %v554 = vadd.f32 %v438, %v553
      %v555 = vpop.f32.mrb[0].mxu0
      %v556 = vpop.f32.mrb[0].mxu0
      %v557 = vadd.f32 %v438, %v556
      %v558 = vpop.f32.mrb[0].mxu0
      %559 = vmatprep.mubr.bf16.mxu0 0
      %560 = vmatmul.mubr.bf16.gmra.mrb[0].mxu0 %v416
      %v561 = vpop.f32.mrb[0].mxu0
      %v562 = vadd.f32 %v438, %v561
      %v563 = vpop.f32.mrb[0].mxu0
      %v564 = vpop.f32.mrb[0].mxu0
      %v565 = vadd.f32 %v438, %v564
      %v566 = vpop.f32.mrb[0].mxu0
      %567 = vmatprep.mubr.bf16.mxu0 0
      %568 = vmatmul.mubr.bf16.gmra.mrb[0].mxu0 %v417
      %v569 = vpop.f32.mrb[0].mxu0
      %v570 = vadd.f32 %v438, %v569
      %v571 = vpop.f32.mrb[0].mxu0
      %v572 = vpop.f32.mrb[0].mxu0
      %v573 = vpop.f32.mrb[0].mxu0
      %574 = vdwg.mxu0
      %v575 = vtanh.pop %v522
      %v576 = vtanh.pop %v525
      %v577 = vtanh.pop %v530
      %v578 = vtanh.pop %v533
      %v579 = vtanh.pop %v538
      %v580 = vtanh.pop %v541
      %v581 = vtanh.pop %v546
      %v582 = vtanh.pop %v549
      %v583 = vtanh.pop %v554
      %v584 = vtanh.pop %v557
      %v585 = vtanh.pop %v562
      %v586 = vtanh.pop %v565
      %v587 = vtanh.pop %v570
      %v588 = vpack.c.bf16 %v576, %v575
      %v589 = vpack.c.bf16 %v578, %v577
      %v590 = vpack.c.bf16 %v580, %v579
      %v591 = vpack.c.bf16 %v582, %v581
      %v592 = vpack.c.bf16 %v584, %v583
      %v593 = vpack.c.bf16 %v586, %v585
      %v594 = vpack.c.bf16 %v587, %v587
      %v595 = vld [vmem:[%s3] sm:$0xf]
      %v596 = vld [vmem:[%s3 + $0x4] sm:$0xf]
      %v597 = vld [vmem:[%s3 + $0x8] sm:$0xf]
      %v598 = vld [vmem:[%s3 + $0xc] sm:$0xf]
      %v599 = vld [vmem:[%s3 + $0x10] sm:$0xf]
      %v600 = vld [vmem:[%s3 + $0x14] sm:$0xf]
      %v601 = vld [vmem:[%s3 + $0x18] sm:$0xf]
      %v602 = vld [vmem:[%s3 + $0x1c] sm:$0xf]
      %v603 = vld [vmem:[%s3 + $0x20] sm:$0xf]
      %v604 = vld [vmem:[%s3 + $0x24] sm:$0xf]
      %v605 = vld [vmem:[%s3 + $0x28] sm:$0xf]
      %v606 = vld [vmem:[%s3 + $0x2c] sm:$0xf]
      %v607 = vld [vmem:[%s3 + $0x30] sm:$0xf]
      %v608 = vld [vmem:[%s3 + $0x34] sm:$0xf]
      %v609 = vld [vmem:[%s3 + $0x38] sm:$0xf]
      %v610 = vld [vmem:[%s3 + $0x3c] sm:$0xf]
      %v611 = vld [vmem:[%s4 + $0x2] sm:$0x1]
      %v612 = vlaneseq
      %v613 = vshrl.u32 %v612, 7
      %v614 = vsub.s32 0, %v613
      %v615 = vrot.slane %v611, %v614
      %v632 = vunpack.c.l.b16 %v595
      %v633 = vunpack.c.l.b16 %v596
      %v634 = vunpack.c.l.b16 %v597
      %v635 = vunpack.c.l.b16 %v598
      %v636 = vunpack.c.l.b16 %v599
      %v637 = vunpack.c.l.b16 %v600
      %v638 = vunpack.c.l.b16 %v601
      %v639 = vunpack.c.l.b16 %v602
      %v640 = vunpack.c.l.b16 %v603
      %v641 = vunpack.c.l.b16 %v604
      %v642 = vunpack.c.l.b16 %v605
      %v643 = vunpack.c.l.b16 %v606
      %v644 = vunpack.c.l.b16 %v607
      %v645 = vunpack.c.l.b16 %v608
      %v646 = vunpack.c.l.b16 %v609
      %v647 = vunpack.c.l.b16 %v610
      %v648 = vpack.c.b16 %v633, %v632
      %v649 = vpack.c.b16 %v635, %v634
      %v650 = vpack.c.b16 %v637, %v636
      %v651 = vpack.c.b16 %v639, %v638
      %v652 = vpack.c.b16 %v641, %v640
      %v653 = vpack.c.b16 %v643, %v642
      %v654 = vpack.c.b16 %v645, %v644
      %v655 = vpack.c.b16 %v647, %v646
      %664 = vmatprep.subr.bf16.mxu0 0
      %665 = vmatpush1.bf16.msra.mxu0 %v648
      %666 = vmatprep.subr.bf16.mxu0 0
      %667 = vmatpush1.bf16.msra.mxu0 %v649
      %668 = vmatprep.subr.bf16.mxu0 0
      %669 = vmatpush1.bf16.msra.mxu0 %v650
      %670 = vmatprep.subr.bf16.mxu0 0
      %671 = vmatpush1.bf16.msra.mxu0 %v651
      %672 = vmatprep.subr.bf16.mxu0 0
      %673 = vmatpush1.bf16.msra.mxu0 %v652
      %674 = vmatprep.subr.bf16.mxu0 0
      %675 = vmatpush1.bf16.msra.mxu0 %v653
      %676 = vmatprep.subr.bf16.mxu0 0
      %677 = vmatpush1.bf16.msra.mxu0 %v654
      %678 = vmatprep.subr.bf16.mxu0 0
      %679 = vmatpush1.bf16.msra.mxu0 %v655
      %680 = vmatprep.subr.bf16.mxu0 0
      %681 = vmatpush1.bf16.msra.mxu0 0
      %682 = vmatprep.subr.bf16.mxu0 0
      %683 = vmatpush1.bf16.msra.mxu0 0
      %684 = vmatprep.subr.bf16.mxu0 0
      %685 = vmatpush1.bf16.msra.mxu0 0
      %686 = vmatprep.subr.bf16.mxu0 0
      %687 = vmatpush1.bf16.msra.mxu0 0
      %688 = vmatprep.subr.bf16.mxu0 0
      %689 = vmatpush1.bf16.msra.mxu0 0
      %690 = vmatprep.subr.bf16.mxu0 0
      %691 = vmatpush1.bf16.msra.mxu0 0
      %692 = vmatprep.subr.bf16.mxu0 0
      %693 = vmatpush1.bf16.msra.mxu0 0
      %694 = vmatprep.subr.bf16.mxu0 0
      %695 = vmatpush1.bf16.msra.mxu0 0
      %696 = vmatprep.mubr.bf16.mxu0 0
      %697 = vmatmul.mubr.bf16.gmra.mrb[0].mxu0 %v588
      %v698 = vpop.f32.mrb[0].mxu0
      %v699 = vadd.f32 %v615, %v698
      %v700 = vpop.f32.mrb[0].mxu0
      %v701 = vpop.f32.mrb[0].mxu0
      %v702 = vadd.f32 %v615, %v701
      %v703 = vpop.f32.mrb[0].mxu0
      %704 = vmatprep.mubr.bf16.mxu0 0
      %705 = vmatmul.mubr.bf16.gmra.mrb[0].mxu0 %v589
      %v706 = vpop.f32.mrb[0].mxu0
      %v707 = vadd.f32 %v615, %v706
      %v708 = vpop.f32.mrb[0].mxu0
      %v709 = vpop.f32.mrb[0].mxu0
      %v710 = vadd.f32 %v615, %v709
      %v711 = vpop.f32.mrb[0].mxu0
      %712 = vmatprep.mubr.bf16.mxu0 0
      %713 = vmatmul.mubr.bf16.gmra.mrb[0].mxu0 %v590
      %v714 = vpop.f32.mrb[0].mxu0
      %v715 = vadd.f32 %v615, %v714
      %v716 = vpop.f32.mrb[0].mxu0
      %v717 = vpop.f32.mrb[0].mxu0
      %v718 = vadd.f32 %v615, %v717
      %v719 = vpop.f32.mrb[0].mxu0
      %720 = vmatprep.mubr.bf16.mxu0 0
      %721 = vmatmul.mubr.bf16.gmra.mrb[0].mxu0 %v591
      %v722 = vpop.f32.mrb[0].mxu0
      %v723 = vadd.f32 %v615, %v722
      %v724 = vpop.f32.mrb[0].mxu0
      %v725 = vpop.f32.mrb[0].mxu0
      %v726 = vadd.f32 %v615, %v725
      %v727 = vpop.f32.mrb[0].mxu0
      %728 = vmatprep.mubr.bf16.mxu0 0
      %729 = vmatmul.mubr.bf16.gmra.mrb[0].mxu0 %v592
      %v730 = vpop.f32.mrb[0].mxu0
      %v731 = vadd.f32 %v615, %v730
      %v732 = vpop.f32.mrb[0].mxu0
      %v733 = vpop.f32.mrb[0].mxu0
      %v734 = vadd.f32 %v615, %v733
      %v735 = vpop.f32.mrb[0].mxu0
      %736 = vmatprep.mubr.bf16.mxu0 0
      %737 = vmatmul.mubr.bf16.gmra.mrb[0].mxu0 %v593
      %v738 = vpop.f32.mrb[0].mxu0
      %v739 = vadd.f32 %v615, %v738
      %v740 = vpop.f32.mrb[0].mxu0
      %v741 = vpop.f32.mrb[0].mxu0
      %v742 = vadd.f32 %v615, %v741
      %v743 = vpop.f32.mrb[0].mxu0
      %744 = vmatprep.mubr.bf16.mxu0 0
      %745 = vmatmul.mubr.bf16.gmra.mrb[0].mxu0 %v594
      %v746 = vpop.f32.mrb[0].mxu0
      %v747 = vadd.f32 %v615, %v746
      %v748 = vpop.f32.mrb[0].mxu0
      %v749 = vpop.f32.mrb[0].mxu0
      %v750 = vpop.f32.mrb[0].mxu0
      %751 = vdwg.mxu0
      %vm752 = vcmask 64512
      %753 = vst.msk [vmem:[%s226] sm:$0xff] %vm752, %v699
      %754 = vst.msk [vmem:[%s226 + $0x8] sm:$0xff] %vm752, %v702
      %755 = vst.msk [vmem:[%s226 + $0x10] sm:$0xff] %vm752, %v707
      %756 = vst.msk [vmem:[%s226 + $0x18] sm:$0xff] %vm752, %v710
      %757 = vst.msk [vmem:[%s226 + $0x20] sm:$0xff] %vm752, %v715
      %758 = vst.msk [vmem:[%s226 + $0x28] sm:$0xff] %vm752, %v718
      %759 = vst.msk [vmem:[%s226 + $0x30] sm:$0xff] %vm752, %v723
      %760 = vst.msk [vmem:[%s226 + $0x38] sm:$0xff] %vm752, %v726
      %761 = vst.msk [vmem:[%s226 + $0x40] sm:$0xff] %vm752, %v731
      %762 = vst.msk [vmem:[%s226 + $0x48] sm:$0xff] %vm752, %v734
      %763 = vst.msk [vmem:[%s226 + $0x50] sm:$0xff] %vm752, %v739
      %764 = vst.msk [vmem:[%s226 + $0x58] sm:$0xff] %vm752, %v742
      %765 = vst.msk [vmem:[%s226 + $0x60] sm:$0xff] %vm752, %v747
      %s766 = smul.u32 13, %s16
      %p767 = scmp.lt.s32.totalorder %s766, 25
      %s768 = scalar_select %p767, %s766, 25
      %s769 = smul.addr %s768, 8
      %s770 = scalar_lea.vmem %s5, %s769
      // Predicated region
      $region41: #{ffn_forward.1} parent=39 // pred_check
        %p771 = pneg %p144
      $region42: #{ffn_forward.1} parent=39 // pred_check_branch
        %773 = sbr.rel (%p771) target = $region44
      $region43: #{ffn_forward.1} parent=39 // pred_region
        %s774 = smul.u32 13, %s16
      $region44: #{ffn_forward.1} parent=39 // pred_fallthru
        _
    $region40: #{ffn_forward.1} parent=5 // pred_fallthru
      _
    %p775 = scmp.le.s32.totalorder 2, %s11
    // Predicated region
    $region45: #{ffn_forward.1} parent=5 // pred_check
      %p776 = pneg %p775
    $region46: #{ffn_forward.1} parent=5 // pred_check_branch
      %778 = sbr.rel (%p776) target = $region48
    $region47: #{ffn_forward.1} parent=5 // pred_region
      %s779 = ssub.s32 %s11, 2
      // Predicated region
      $region49: #{ffn_forward.1} parent=47 // pred_check
        %p780 = pneg %p150
      $region50: #{ffn_forward.1} parent=47 // pred_check_branch
        %782 = sbr.rel (%p780) target = $region52
      $region51: #{ffn_forward.1} parent=47 // pred_region
        %s783 = smul.u32 13, %s17
        %p784 = scmp.lt.s32.totalorder %s783, 25
        %s785 = scalar_select %p784, %s783, 25
        %s786 = smul.addr %s785, 8
        %s787 = scalar_lea.vmem %s5, %s786
      $region52: #{ffn_forward.1} parent=47 // pred_fallthru
        _
    $region48: #{ffn_forward.1} parent=5 // pred_fallthru
      _
  $region6: #{ffn_forward.1} parent=0 // loop_footer
    %s15 = sadd.s32 1, %s11
  $region7: #{ffn_forward.1} parent=0 // loop_footer_branch
    %10 = sbr.rel target = $region3
  $region8: #{ffn_forward.1} parent=0 // loop_exit
    _

</llo_original>
